<compile_context>
chip_gen: v5e
topology: v5e:2x2
jax: 0.10.0
libtpu: 0.0.40
codegen_flags: <defaults>
</compile_context>

<pallas_src>
import jax
import jax.numpy as jnp
from jax.experimental import pallas as pl
from jax.experimental.pallas import tpu as pltpu

LATENT_DIM = 64
IN_DIM = 28 * 28   # 784
HID_DIM = 128

_DEFAULT_BATCH_TILE = 1024   # HBM-bound: large tiles amortize ~0.35 us/step overhead
_MIN_SPLIT_BATCH = 512       # only force >=2 grid steps (v7x dual-TC) past this size


def _round_up(x, m):
    return (x + m - 1) // m * m


def autoencoder_kernel(x_ref,
                       w1_ref, b1_ref,
                       w2_ref, b2_ref,
                       w3_ref, b3_ref,
                       w4_ref, b4_ref,
                       out_ref):
    """Fused autoencoder forward for one [tb, 784] batch tile.

    x is f32 in HBM, cast to bf16 here; weights are bf16; matmuls accumulate
    in f32; bias/ReLU/sigmoid run in f32; reconstruction is stored as f32.
    """
    x = x_ref[...].astype(jnp.bfloat16)                               # [tb, 784] bf16

    # ---- encoder ----
    h1 = jnp.dot(x, w1_ref[...], preferred_element_type=jnp.float32) + b1_ref[...]
    h1 = jnp.maximum(h1, 0.0).astype(jnp.bfloat16)                    # ReLU

    z = jnp.dot(h1, w2_ref[...], preferred_element_type=jnp.float32) + b2_ref[...]
    z = jnp.maximum(z, 0.0).astype(jnp.bfloat16)                      # ReLU (latent)

    # ---- decoder ----
    h2 = jnp.dot(z, w3_ref[...], preferred_element_type=jnp.float32) + b3_ref[...]
    h2 = jnp.maximum(h2, 0.0).astype(jnp.bfloat16)                    # ReLU

    logits = jnp.dot(h2, w4_ref[...], preferred_element_type=jnp.float32) + b4_ref[...]
    # Sigmoid = 1 / (1 + exp(-x)); exp and the approximate reciprocal both run
    # on the EUP slot instead of a VALU divide over tb x 784 f32 elements.
    out_ref[...] = pl.reciprocal(1.0 + jnp.exp(-logits), approx=True)


def _vmem_estimate_bytes(tb):
    """VMEM estimate for one pipelined grid step (intermediates counted once)."""
    bf16, f32 = 2, 4
    x_tile = tb * IN_DIM * f32                 # f32 input tile
    out_tile = tb * IN_DIM * f32               # f32 output tile
    weights = (IN_DIM * HID_DIM + HID_DIM * LATENT_DIM
               + LATENT_DIM * HID_DIM + HID_DIM * IN_DIM) * bf16
    biases = (2 * HID_DIM + LATENT_DIM + IN_DIM) * f32
    interm = tb * (IN_DIM + 2 * HID_DIM + LATENT_DIM) * f32   # live hiddens + logits
    # x/out tiles and (conservatively) weights double-buffered by the pipeline.
    return 2 * (x_tile + out_tile) + 2 * (weights + biases) + interm


def _vmem_budget_bytes():
    """Generation-aware scoped-VMEM budget."""
    cap = 0
    try:
        cap = int(getattr(pltpu.get_tpu_info(), "vmem_capacity_bytes", 0))
    except Exception:
        cap = 0
    if cap and cap <= (64 << 20):
        return 52 << 20       # v7x: 64 MiB physical -> leave compiler headroom
    if cap:
        return 100 << 20      # v5e/v6e: 128 MiB physical -> unlock 2048-row tiles
    return 52 << 20           # unknown: portable/conservative


def autoencoder_forward(x_nchw, params, *, batch_tile=_DEFAULT_BATCH_TILE):
    """x_nchw: [B, 1, 28, 28] float -> reconstruction [B, 784] float32."""
    B = x_nchw.shape[0]
    x_flat = x_nchw.reshape(B, IN_DIM).astype(jnp.float32)    # nn.Flatten (free reshape)

    # --- batch-tile selection ---
    tb = min(int(batch_tile), _round_up(B, 8))
    tb = max(_round_up(tb, 8), 8)
    # Keep >=2 grid steps for large batches so the 'parallel' axis can be split
    # across v7x's two TensorCores (no effect on single-TC v5e/v6e).
    if B > _MIN_SPLIT_BATCH and pl.cdiv(B, tb) < 2:
        tb = min(tb, max(_round_up(pl.cdiv(B, 2), 8), 8))

    budget = _vmem_budget_bytes()
    while _vmem_estimate_bytes(tb) > budget and tb > 8:
        tb = max(_round_up(tb // 2, 8), 8)
    est = _vmem_estimate_bytes(tb)
    vmem_limit = int(min(max(int(1.5 * est), 32 << 20), budget))

    grid_len = pl.cdiv(B, tb)

    (w1, b1), (w2, b2), (w3, b3), (w4, b4) = params
    args = (x_flat,
            w1.astype(jnp.bfloat16), b1.astype(jnp.float32),
            w2.astype(jnp.bfloat16), b2.astype(jnp.float32),
            w3.astype(jnp.bfloat16), b3.astype(jnp.float32),
            w4.astype(jnp.bfloat16), b4.astype(jnp.float32))

    const2 = lambda i: (0, 0)   # grid-invariant operands: DMA'd once, kept resident
    in_specs = [
        pl.BlockSpec((tb, IN_DIM), lambda i: (i, 0)),          # x tile (f32)
        pl.BlockSpec((IN_DIM, HID_DIM), const2),               # w1
        pl.BlockSpec((1, HID_DIM), const2),                    # b1
        pl.BlockSpec((HID_DIM, LATENT_DIM), const2),           # w2
        pl.BlockSpec((1, LATENT_DIM), const2),                 # b2
        pl.BlockSpec((LATENT_DIM, HID_DIM), const2),           # w3
        pl.BlockSpec((1, HID_DIM), const2),                    # b3
        pl.BlockSpec((HID_DIM, IN_DIM), const2),               # w4
        pl.BlockSpec((1, IN_DIM), const2),                     # b4
    ]

    call = pl.pallas_call(
        autoencoder_kernel,
        out_shape=jax.ShapeDtypeStruct((B, IN_DIM), jnp.float32),
        grid=(grid_len,),
        in_specs=in_specs,
        out_specs=pl.BlockSpec((tb, IN_DIM), lambda i: (i, 0)),
        compiler_params=pltpu.CompilerParams(
            dimension_semantics=("parallel",),
            vmem_limit_bytes=vmem_limit,
        ),
    )
    return call(*args)


def init_params(key):
    """PyTorch-style uniform init. Weights stored (in, out), biases (1, out)."""
    def linear(k, fan_in, fan_out):
        kw, kb = jax.random.split(k)
        bound = 1.0 / jnp.sqrt(fan_in)
        w = jax.random.uniform(kw, (fan_in, fan_out), jnp.float32, -bound, bound)
        b = jax.random.uniform(kb, (1, fan_out), jnp.float32, -bound, bound)
        return w, b

    k1, k2, k3, k4 = jax.random.split(key, 4)
    return (
        linear(k1, IN_DIM, HID_DIM),        # encoder Linear(784, 128)
        linear(k2, HID_DIM, LATENT_DIM),    # encoder Linear(128, 64)
        linear(k3, LATENT_DIM, HID_DIM),    # decoder Linear(64, 128)
        linear(k4, HID_DIM, IN_DIM),        # decoder Linear(128, 784)
    )


def reference_forward(x_nchw, params):
    """Pure-JAX reference with the same bf16 matmul / f32 accumulate recipe."""
    B = x_nchw.shape[0]
    (w1, b1), (w2, b2), (w3, b3), (w4, b4) = params

    def lin(h, w, b):
        return jnp.dot(h, w.astype(jnp.bfloat16),
                       preferred_element_type=jnp.float32) + b.astype(jnp.float32)

    h = x_nchw.reshape(B, IN_DIM).astype(jnp.bfloat16)
    h = jnp.maximum(lin(h, w1, b1), 0.0).astype(jnp.bfloat16)
    h = jnp.maximum(lin(h, w2, b2), 0.0).astype(jnp.bfloat16)
    h = jnp.maximum(lin(h, w3, b3), 0.0).astype(jnp.bfloat16)
    return jax.nn.sigmoid(lin(h, w4, b4))


if __name__ == "__main__":
    key = jax.random.PRNGKey(0)
    kx1, kx2, kp = jax.random.split(key, 3)
    params = init_params(kp)

    # Small MNIST-like batch: NCHW [8, 1, 28, 28] (single grid step, tb=8).
    x1 = jax.random.uniform(kx1, (8, 1, 28, 28), jnp.float32)
    out1 = jax.block_until_ready(autoencoder_forward(x1, params))
    ref1 = reference_forward(x1, params)
    assert out1.shape == (8, IN_DIM)
    assert jnp.allclose(out1, ref1, atol=1e-2, rtol=1e-2), \
        float(jnp.max(jnp.abs(out1 - ref1)))

    # Multi-step pipelined grid with a ragged last block (300 -> 128,128,44),
    # no padding and no output slice.
    x2 = jax.random.uniform(kx2, (300, 1, 28, 28), jnp.float32)
    out2 = jax.block_until_ready(autoencoder_forward(x2, params, batch_tile=128))
    ref2 = reference_forward(x2, params)
    assert out2.shape == (300, IN_DIM)
    assert jnp.allclose(out2, ref2, atol=1e-2, rtol=1e-2), \
        float(jnp.max(jnp.abs(out2 - ref2)))

    print("KERNEL_OK")
</pallas_src>

<mosaic_0001>
module attributes {stable_mosaic.version = 11 : i64} {
  func.func @autoencoder_kernel(%arg0: i32, %arg1: memref<8x784xf32, #tpu.memory_space<vmem>>, %arg2: memref<784x128xbf16, #tpu.memory_space<vmem>>, %arg3: memref<1x128xf32, #tpu.memory_space<vmem>>, %arg4: memref<128x64xbf16, #tpu.memory_space<vmem>>, %arg5: memref<1x64xf32, #tpu.memory_space<vmem>>, %arg6: memref<64x128xbf16, #tpu.memory_space<vmem>>, %arg7: memref<1x128xf32, #tpu.memory_space<vmem>>, %arg8: memref<128x784xbf16, #tpu.memory_space<vmem>>, %arg9: memref<1x784xf32, #tpu.memory_space<vmem>>, %arg10: memref<8x784xf32, #tpu.memory_space<vmem>>) attributes {dimension_semantics = [#tpu.dimension_semantics<parallel>], iteration_bounds = array<i64: 1>, scalar_prefetch = 0 : i64, scratch_operands = 0 : i64, tpu.core_type = #tpu.core_type<tc>, window_params = [{transform_indices = @transform_0, window_bounds = array<i64: 8, 784>}, {pipeline_mode = #tpu.pipeline_mode<synchronous>, transform_indices = @transform_1, window_bounds = array<i64: 784, 128>}, {pipeline_mode = #tpu.pipeline_mode<synchronous>, transform_indices = @transform_2, window_bounds = array<i64: 1, 128>}, {pipeline_mode = #tpu.pipeline_mode<synchronous>, transform_indices = @transform_3, window_bounds = array<i64: 128, 64>}, {pipeline_mode = #tpu.pipeline_mode<synchronous>, transform_indices = @transform_4, window_bounds = array<i64: 1, 64>}, {pipeline_mode = #tpu.pipeline_mode<synchronous>, transform_indices = @transform_5, window_bounds = array<i64: 64, 128>}, {pipeline_mode = #tpu.pipeline_mode<synchronous>, transform_indices = @transform_6, window_bounds = array<i64: 1, 128>}, {pipeline_mode = #tpu.pipeline_mode<synchronous>, transform_indices = @transform_7, window_bounds = array<i64: 128, 784>}, {pipeline_mode = #tpu.pipeline_mode<synchronous>, transform_indices = @transform_8, window_bounds = array<i64: 1, 784>}, {transform_indices = @transform_9, window_bounds = array<i64: 8, 784>}]} {
    %c0 = arith.constant 0 : index
    %c0_0 = arith.constant 0 : index
    %0 = vector.load %arg1[%c0, %c0_0] : memref<8x784xf32, #tpu.memory_space<vmem>>, vector<8x784xf32>
    %1 = arith.truncf %0 : vector<8x784xf32> to vector<8x784xbf16>
    %c0_1 = arith.constant 0 : index
    %c0_2 = arith.constant 0 : index
    %2 = vector.load %arg2[%c0_1, %c0_2] : memref<784x128xbf16, #tpu.memory_space<vmem>>, vector<784x128xbf16>
    %cst = arith.constant dense<0.000000e+00> : vector<8x128xf32>
    %3 = tpu.matmul %1, %2, %cst {dimension_numbers = #tpu.dot_dimension_numbers<[1], [0], [0], [1], [0, 0, 1, 1], [], []>} : vector<8x784xbf16>, vector<784x128xbf16>, vector<8x128xf32> -> vector<8x128xf32>
    %c0_3 = arith.constant 0 : index
    %c0_4 = arith.constant 0 : index
    %4 = vector.load %arg3[%c0_3, %c0_4] : memref<1x128xf32, #tpu.memory_space<vmem>>, vector<1x128xf32>
    %5 = vector.broadcast %4 : vector<1x128xf32> to vector<8x128xf32>
    %6 = arith.addf %3, %5 : vector<8x128xf32>
    %cst_5 = arith.constant 0.000000e+00 : f32
    %7 = vector.broadcast %cst_5 : f32 to vector<8x128xf32>
    %8 = arith.maximumf %6, %7 : vector<8x128xf32>
    %9 = arith.truncf %8 : vector<8x128xf32> to vector<8x128xbf16>
    %c0_6 = arith.constant 0 : index
    %c0_7 = arith.constant 0 : index
    %10 = vector.load %arg4[%c0_6, %c0_7] : memref<128x64xbf16, #tpu.memory_space<vmem>>, vector<128x64xbf16>
    %cst_8 = arith.constant dense<0.000000e+00> : vector<8x64xf32>
    %11 = tpu.matmul %9, %10, %cst_8 {dimension_numbers = #tpu.dot_dimension_numbers<[1], [0], [0], [1], [0, 0, 1, 1], [], []>} : vector<8x128xbf16>, vector<128x64xbf16>, vector<8x64xf32> -> vector<8x64xf32>
    %c0_9 = arith.constant 0 : index
    %c0_10 = arith.constant 0 : index
    %12 = vector.load %arg5[%c0_9, %c0_10] : memref<1x64xf32, #tpu.memory_space<vmem>>, vector<1x64xf32>
    %13 = vector.broadcast %12 : vector<1x64xf32> to vector<8x64xf32>
    %14 = arith.addf %11, %13 : vector<8x64xf32>
    %cst_11 = arith.constant 0.000000e+00 : f32
    %15 = vector.broadcast %cst_11 : f32 to vector<8x64xf32>
    %16 = arith.maximumf %14, %15 : vector<8x64xf32>
    %17 = arith.truncf %16 : vector<8x64xf32> to vector<8x64xbf16>
    %c0_12 = arith.constant 0 : index
    %c0_13 = arith.constant 0 : index
    %18 = vector.load %arg6[%c0_12, %c0_13] : memref<64x128xbf16, #tpu.memory_space<vmem>>, vector<64x128xbf16>
    %cst_14 = arith.constant dense<0.000000e+00> : vector<8x128xf32>
    %19 = tpu.matmul %17, %18, %cst_14 {dimension_numbers = #tpu.dot_dimension_numbers<[1], [0], [0], [1], [0, 0, 1, 1], [], []>} : vector<8x64xbf16>, vector<64x128xbf16>, vector<8x128xf32> -> vector<8x128xf32>
    %c0_15 = arith.constant 0 : index
    %c0_16 = arith.constant 0 : index
    %20 = vector.load %arg7[%c0_15, %c0_16] : memref<1x128xf32, #tpu.memory_space<vmem>>, vector<1x128xf32>
    %21 = vector.broadcast %20 : vector<1x128xf32> to vector<8x128xf32>
    %22 = arith.addf %19, %21 : vector<8x128xf32>
    %cst_17 = arith.constant 0.000000e+00 : f32
    %23 = vector.broadcast %cst_17 : f32 to vector<8x128xf32>
    %24 = arith.maximumf %22, %23 : vector<8x128xf32>
    %25 = arith.truncf %24 : vector<8x128xf32> to vector<8x128xbf16>
    %c0_18 = arith.constant 0 : index
    %c0_19 = arith.constant 0 : index
    %26 = vector.load %arg8[%c0_18, %c0_19] : memref<128x784xbf16, #tpu.memory_space<vmem>>, vector<128x784xbf16>
    %cst_20 = arith.constant dense<0.000000e+00> : vector<8x784xf32>
    %27 = tpu.matmul %25, %26, %cst_20 {dimension_numbers = #tpu.dot_dimension_numbers<[1], [0], [0], [1], [0, 0, 1, 1], [], []>} : vector<8x128xbf16>, vector<128x784xbf16>, vector<8x784xf32> -> vector<8x784xf32>
    %c0_21 = arith.constant 0 : index
    %c0_22 = arith.constant 0 : index
    %28 = vector.load %arg9[%c0_21, %c0_22] : memref<1x784xf32, #tpu.memory_space<vmem>>, vector<1x784xf32>
    %29 = vector.broadcast %28 : vector<1x784xf32> to vector<8x784xf32>
    %30 = arith.addf %27, %29 : vector<8x784xf32>
    %cst_23 = arith.constant 0.000000e+00 : f32
    %31 = vector.broadcast %cst_23 : f32 to vector<8x784xf32>
    %32 = arith.subf %31, %30 : vector<8x784xf32>
    %33 = math.exp %32 : vector<8x784xf32>
    %cst_24 = arith.constant 1.000000e+00 : f32
    %34 = vector.broadcast %cst_24 : f32 to vector<8x784xf32>
    %35 = arith.addf %34, %33 : vector<8x784xf32>
    %36 = tpu.reciprocal %35 {approx = true} : vector<8x784xf32> -> vector<8x784xf32>
    %c0_25 = arith.constant 0 : index
    %c0_26 = arith.constant 0 : index
    %37 = vector.load %arg10[%c0_25, %c0_26] : memref<8x784xf32, #tpu.memory_space<vmem>>, vector<8x784xf32>
    tpu.vector_store %arg10[%c0_25, %c0_26], %36 {strides = array<i32>} : memref<8x784xf32, #tpu.memory_space<vmem>>, vector<8x784xf32>,
    return
  }
  func.func @transform_0(%arg0: i32) -> (i32, i32) {
    %c0_i32 = arith.constant 0 : i32
    %c0_i32_0 = arith.constant 0 : i32
    return %arg0, %c0_i32 : i32, i32
  }
  func.func @transform_1(%arg0: i32) -> (i32, i32) {
    %c0_i32 = arith.constant 0 : i32
    %c0_i32_0 = arith.constant 0 : i32
    %c0_i32_1 = arith.constant 0 : i32
    return %c0_i32, %c0_i32_0 : i32, i32
  }
  func.func @transform_2(%arg0: i32) -> (i32, i32) {
    %c0_i32 = arith.constant 0 : i32
    %c0_i32_0 = arith.constant 0 : i32
    %c0_i32_1 = arith.constant 0 : i32
    return %c0_i32, %c0_i32_0 : i32, i32
  }
  func.func @transform_3(%arg0: i32) -> (i32, i32) {
    %c0_i32 = arith.constant 0 : i32
    %c0_i32_0 = arith.constant 0 : i32
    %c0_i32_1 = arith.constant 0 : i32
    return %c0_i32, %c0_i32_0 : i32, i32
  }
  func.func @transform_4(%arg0: i32) -> (i32, i32) {
    %c0_i32 = arith.constant 0 : i32
    %c0_i32_0 = arith.constant 0 : i32
    %c0_i32_1 = arith.constant 0 : i32
    return %c0_i32, %c0_i32_0 : i32, i32
  }
  func.func @transform_5(%arg0: i32) -> (i32, i32) {
    %c0_i32 = arith.constant 0 : i32
    %c0_i32_0 = arith.constant 0 : i32
    %c0_i32_1 = arith.constant 0 : i32
    return %c0_i32, %c0_i32_0 : i32, i32
  }
  func.func @transform_6(%arg0: i32) -> (i32, i32) {
    %c0_i32 = arith.constant 0 : i32
    %c0_i32_0 = arith.constant 0 : i32
    %c0_i32_1 = arith.constant 0 : i32
    return %c0_i32, %c0_i32_0 : i32, i32
  }
  func.func @transform_7(%arg0: i32) -> (i32, i32) {
    %c0_i32 = arith.constant 0 : i32
    %c0_i32_0 = arith.constant 0 : i32
    %c0_i32_1 = arith.constant 0 : i32
    return %c0_i32, %c0_i32_0 : i32, i32
  }
  func.func @transform_8(%arg0: i32) -> (i32, i32) {
    %c0_i32 = arith.constant 0 : i32
    %c0_i32_0 = arith.constant 0 : i32
    %c0_i32_1 = arith.constant 0 : i32
    return %c0_i32, %c0_i32_0 : i32, i32
  }
  func.func @transform_9(%arg0: i32) -> (i32, i32) {
    %c0_i32 = arith.constant 0 : i32
    %c0_i32_0 = arith.constant 0 : i32
    return %arg0, %c0_i32 : i32, i32
  }
}

</mosaic_0001>

<llo_original>
// kernel: tpu_custom_call.1
$region0: #{tpu_custom_call.1}
  #allocation0 [shape = 'u32[]', space=smem, size = 0x4, offset = 0x4, fixed_abs, tag = 'smem constant byte address 0x4 - core index']
  #allocation1 [shape = 'u32[72,128]{1,0:T(1,128)}', space=vmem, size = 0x9000, scoped, tag = 'internal scratch']
  %s0 = inlined_call_operand.vmem [shape: f32[8,784], index: 0, kind: input, shape index: {}]
  %s1 = inlined_call_operand.vmem [shape: bf16[784,128], index: 1, kind: input, shape index: {}]
  %s2 = inlined_call_operand.vmem [shape: f32[1,128], index: 2, kind: input, shape index: {}]
  %s3 = inlined_call_operand.vmem [shape: bf16[128,64], index: 3, kind: input, shape index: {}]
  %s4 = inlined_call_operand.vmem [shape: f32[1,64], index: 4, kind: input, shape index: {}]
  %s5 = inlined_call_operand.vmem [shape: bf16[64,128], index: 5, kind: input, shape index: {}]
  %s6 = inlined_call_operand.vmem [shape: f32[1,128], index: 6, kind: input, shape index: {}]
  %s7 = inlined_call_operand.vmem [shape: bf16[128,784], index: 7, kind: input, shape index: {}]
  %s8 = inlined_call_operand.vmem [shape: f32[1,784], index: 8, kind: input, shape index: {}]
  %s9 = inlined_call_operand.hbm [shape: f32[8,784], index: 9, kind: output, shape index: {}]
  %s10 = sld [smem:[#allocation0]]
  $region46: #{tpu_custom_call.1} parent=0
    _
  %s12 = ssub.s32 1, %s10
  %s13 = scalar_select 0, %s12, %s10
  $region1: #{tpu_custom_call.1} parent=0
    #allocation2 [shape = 'u8[28672]{0}', space=vmem, size = 0x7000, scoped, tag = 'output window, operand 0, single buffered']
    #allocation3 [shape = 's32[1]{0}', space=sflag, size = 0x4, scoped, tag = 'scoped memory for tpu_custom_call.1']
    %14 = vsyncpa [#allocation3], 0
    // Predicated region
    $region2: #{tpu_custom_call.1} parent=1 // pred_check
      _
    $region3: #{tpu_custom_call.1} parent=1 // pred_check_branch
      %16 = sbr.rel (0) target = $region5
    $region4: #{tpu_custom_call.1} parent=1 // pred_region
      _
    $region5: #{tpu_custom_call.1} parent=1 // pred_fallthru
      _
    // Predicated region
    $region6: #{tpu_custom_call.1} parent=1 // pred_check
      _
    $region7: #{tpu_custom_call.1} parent=1 // pred_check_branch
      %18 = sbr.rel (0) target = $region9
    $region8: #{tpu_custom_call.1} parent=1 // pred_region
      _
    $region9: #{tpu_custom_call.1} parent=1 // pred_fallthru
      _
    // Predicated region
    $region10: #{tpu_custom_call.1} parent=1 // pred_check
      _
    $region11: #{tpu_custom_call.1} parent=1 // pred_check_branch
      %20 = sbr.rel (0) target = $region13
    $region12: #{tpu_custom_call.1} parent=1 // pred_region
      _
    $region13: #{tpu_custom_call.1} parent=1 // pred_fallthru
      _
    // Predicated region
    $region14: #{tpu_custom_call.1} parent=1 // pred_check
      _
    $region15: #{tpu_custom_call.1} parent=1 // pred_check_branch
      %22 = sbr.rel (0) target = $region17
    $region16: #{tpu_custom_call.1} parent=1 // pred_region
      _
    $region17: #{tpu_custom_call.1} parent=1 // pred_fallthru
      _
    // Predicated region
    $region18: #{tpu_custom_call.1} parent=1 // pred_check
      _
    $region19: #{tpu_custom_call.1} parent=1 // pred_check_branch
      %24 = sbr.rel (0) target = $region21
    $region20: #{tpu_custom_call.1} parent=1 // pred_region
      _
    $region21: #{tpu_custom_call.1} parent=1 // pred_fallthru
      _
    // Predicated region
    $region22: #{tpu_custom_call.1} parent=1 // pred_check
      _
    $region23: #{tpu_custom_call.1} parent=1 // pred_check_branch
      %26 = sbr.rel (0) target = $region25
    $region24: #{tpu_custom_call.1} parent=1 // pred_region
      _
    $region25: #{tpu_custom_call.1} parent=1 // pred_fallthru
      _
    // Predicated region
    $region26: #{tpu_custom_call.1} parent=1 // pred_check
      _
    $region27: #{tpu_custom_call.1} parent=1 // pred_check_branch
      %28 = sbr.rel (0) target = $region29
    $region28: #{tpu_custom_call.1} parent=1 // pred_region
      _
    $region29: #{tpu_custom_call.1} parent=1 // pred_fallthru
      _
    // Predicated region
    $region30: #{tpu_custom_call.1} parent=1 // pred_check
      _
    $region31: #{tpu_custom_call.1} parent=1 // pred_check_branch
      %30 = sbr.rel (0) target = $region33
    $region32: #{tpu_custom_call.1} parent=1 // pred_region
      _
    $region33: #{tpu_custom_call.1} parent=1 // pred_fallthru
      _
    // Predicated region
    $region34: #{tpu_custom_call.1} parent=1 // pred_check
      _
    $region35: #{tpu_custom_call.1} parent=1 // pred_check_branch
      %32 = sbr.rel (0) target = $region37
    $region36: #{tpu_custom_call.1} parent=1 // pred_region
      _
    $region37: #{tpu_custom_call.1} parent=1 // pred_fallthru
      _
    %v34 = vld [vmem:[%s0] sm:$0xff]
    %v35 = vld [vmem:[%s0 + $0x8] sm:$0xff]
    %v36 = vld [vmem:[%s0 + $0x10] sm:$0xff]
    %v37 = vld [vmem:[%s0 + $0x18] sm:$0xff]
    %v38 = vld [vmem:[%s0 + $0x20] sm:$0xff]
    %v39 = vld [vmem:[%s0 + $0x28] sm:$0xff]
    %v40 = vld [vmem:[%s0 + $0x30] sm:$0xff]
    %v41 = vpack.c.bf16 %v34, %v34
    %v42 = vpack.c.bf16 %v35, %v35
    %v43 = vpack.c.bf16 %v36, %v36
    %v44 = vpack.c.bf16 %v37, %v37
    %v45 = vpack.c.bf16 %v38, %v38
    %v46 = vpack.c.bf16 %v39, %v39
    %v47 = vpack.c.bf16 %v40, %v40
    %v48 = vld [vmem:[%s1] sm:$0xf]
    %v49 = vld [vmem:[%s1 + $0x4] sm:$0xf]
    %v50 = vld [vmem:[%s1 + $0x8] sm:$0xf]
    %v51 = vld [vmem:[%s1 + $0xc] sm:$0xf]
    %v52 = vld [vmem:[%s1 + $0x10] sm:$0xf]
    %v53 = vld [vmem:[%s1 + $0x14] sm:$0xf]
    %v54 = vld [vmem:[%s1 + $0x18] sm:$0xf]
    %v55 = vld [vmem:[%s1 + $0x1c] sm:$0xf]
    %v56 = vld [vmem:[%s1 + $0x20] sm:$0xf]
    %v57 = vld [vmem:[%s1 + $0x24] sm:$0xf]
    %v58 = vld [vmem:[%s1 + $0x28] sm:$0xf]
    %v59 = vld [vmem:[%s1 + $0x2c] sm:$0xf]
    %v60 = vld [vmem:[%s1 + $0x30] sm:$0xf]
    %v61 = vld [vmem:[%s1 + $0x34] sm:$0xf]
    %v62 = vld [vmem:[%s1 + $0x38] sm:$0xf]
    %v63 = vld [vmem:[%s1 + $0x3c] sm:$0xf]
    %v64 = vld [vmem:[%s1 + $0x40] sm:$0xf]
    %v65 = vld [vmem:[%s1 + $0x44] sm:$0xf]
    %v66 = vld [vmem:[%s1 + $0x48] sm:$0xf]
    %v67 = vld [vmem:[%s1 + $0x4c] sm:$0xf]
    %v68 = vld [vmem:[%s1 + $0x50] sm:$0xf]
    %v69 = vld [vmem:[%s1 + $0x54] sm:$0xf]
    %v70 = vld [vmem:[%s1 + $0x58] sm:$0xf]
    %v71 = vld [vmem:[%s1 + $0x5c] sm:$0xf]
    %v72 = vld [vmem:[%s1 + $0x60] sm:$0xf]
    %v73 = vld [vmem:[%s1 + $0x64] sm:$0xf]
    %v74 = vld [vmem:[%s1 + $0x68] sm:$0xf]
    %v75 = vld [vmem:[%s1 + $0x6c] sm:$0xf]
    %v76 = vld [vmem:[%s1 + $0x70] sm:$0xf]
    %v77 = vld [vmem:[%s1 + $0x74] sm:$0xf]
    %v78 = vld [vmem:[%s1 + $0x78] sm:$0xf]
    %v79 = vld [vmem:[%s1 + $0x7c] sm:$0xf]
    %v80 = vld [vmem:[%s1 + $0x80] sm:$0xf]
    %v81 = vld [vmem:[%s1 + $0x84] sm:$0xf]
    %v82 = vld [vmem:[%s1 + $0x88] sm:$0xf]
    %v83 = vld [vmem:[%s1 + $0x8c] sm:$0xf]
    %v84 = vld [vmem:[%s1 + $0x90] sm:$0xf]
    %v85 = vld [vmem:[%s1 + $0x94] sm:$0xf]
    %v86 = vld [vmem:[%s1 + $0x98] sm:$0xf]
    %v87 = vld [vmem:[%s1 + $0x9c] sm:$0xf]
    %v88 = vld [vmem:[%s1 + $0xa0] sm:$0xf]
    %v89 = vld [vmem:[%s1 + $0xa4] sm:$0xf]
    %v90 = vld [vmem:[%s1 + $0xa8] sm:$0xf]
    %v91 = vld [vmem:[%s1 + $0xac] sm:$0xf]
    %v92 = vld [vmem:[%s1 + $0xb0] sm:$0xf]
    %v93 = vld [vmem:[%s1 + $0xb4] sm:$0xf]
    %v94 = vld [vmem:[%s1 + $0xb8] sm:$0xf]
    %v95 = vld [vmem:[%s1 + $0xbc] sm:$0xf]
    %v96 = vld [vmem:[%s1 + $0xc0] sm:$0xf]
    %v97 = vld [vmem:[%s1 + $0xc4] sm:$0xf]
    %v98 = vld [vmem:[%s1 + $0xc8] sm:$0xf]
    %v99 = vld [vmem:[%s1 + $0xcc] sm:$0xf]
    %v100 = vld [vmem:[%s1 + $0xd0] sm:$0xf]
    %v101 = vld [vmem:[%s1 + $0xd4] sm:$0xf]
    %v102 = vld [vmem:[%s1 + $0xd8] sm:$0xf]
    %v103 = vld [vmem:[%s1 + $0xdc] sm:$0xf]
    %v104 = vld [vmem:[%s1 + $0xe0] sm:$0xf]
    %v105 = vld [vmem:[%s1 + $0xe4] sm:$0xf]
    %v106 = vld [vmem:[%s1 + $0xe8] sm:$0xf]
    %v107 = vld [vmem:[%s1 + $0xec] sm:$0xf]
    %v108 = vld [vmem:[%s1 + $0xf0] sm:$0xf]
    %v109 = vld [vmem:[%s1 + $0xf4] sm:$0xf]
    %v110 = vld [vmem:[%s1 + $0xf8] sm:$0xf]
    %v111 = vld [vmem:[%s1 + $0xfc] sm:$0xf]
    %v112 = vld [vmem:[%s1 + $0x100] sm:$0xf]
    %v113 = vld [vmem:[%s1 + $0x104] sm:$0xf]
    %v114 = vld [vmem:[%s1 + $0x108] sm:$0xf]
    %v115 = vld [vmem:[%s1 + $0x10c] sm:$0xf]
    %v116 = vld [vmem:[%s1 + $0x110] sm:$0xf]
    %v117 = vld [vmem:[%s1 + $0x114] sm:$0xf]
    %v118 = vld [vmem:[%s1 + $0x118] sm:$0xf]
    %v119 = vld [vmem:[%s1 + $0x11c] sm:$0xf]
    %v120 = vld [vmem:[%s1 + $0x120] sm:$0xf]
    %v121 = vld [vmem:[%s1 + $0x124] sm:$0xf]
    %v122 = vld [vmem:[%s1 + $0x128] sm:$0xf]
    %v123 = vld [vmem:[%s1 + $0x12c] sm:$0xf]
    %v124 = vld [vmem:[%s1 + $0x130] sm:$0xf]
    %v125 = vld [vmem:[%s1 + $0x134] sm:$0xf]
    %v126 = vld [vmem:[%s1 + $0x138] sm:$0xf]
    %v127 = vld [vmem:[%s1 + $0x13c] sm:$0xf]
    %v128 = vld [vmem:[%s1 + $0x140] sm:$0xf]
    %v129 = vld [vmem:[%s1 + $0x144] sm:$0xf]
    %v130 = vld [vmem:[%s1 + $0x148] sm:$0xf]
    %v131 = vld [vmem:[%s1 + $0x14c] sm:$0xf]
    %v132 = vld [vmem:[%s1 + $0x150] sm:$0xf]
    %v133 = vld [vmem:[%s1 + $0x154] sm:$0xf]
    %v134 = vld [vmem:[%s1 + $0x158] sm:$0xf]
    %v135 = vld [vmem:[%s1 + $0x15c] sm:$0xf]
    %v136 = vld [vmem:[%s1 + $0x160] sm:$0xf]
    %v137 = vld [vmem:[%s1 + $0x164] sm:$0xf]
    %v138 = vld [vmem:[%s1 + $0x168] sm:$0xf]
    %v139 = vld [vmem:[%s1 + $0x16c] sm:$0xf]
    %v140 = vld [vmem:[%s1 + $0x170] sm:$0xf]
    %v141 = vld [vmem:[%s1 + $0x174] sm:$0xf]
    %v142 = vld [vmem:[%s1 + $0x178] sm:$0xf]
    %v143 = vld [vmem:[%s1 + $0x17c] sm:$0xf]
    %v144 = vld [vmem:[%s1 + $0x180] sm:$0xf]
    %v145 = vld [vmem:[%s1 + $0x184] sm:$0xf]
    %v146 = vld [vmem:[%s2] sm:$0x1]
    %v148 = vperm.slane %v146, 0
    %v248 = vunpack.c.l.b16 %v48
    %v249 = vunpack.c.l.b16 %v49
    %v250 = vunpack.c.l.b16 %v50
    %v251 = vunpack.c.l.b16 %v51
    %v252 = vunpack.c.l.b16 %v52
    %v253 = vunpack.c.l.b16 %v53
    %v254 = vunpack.c.l.b16 %v54
    %v255 = vunpack.c.l.b16 %v55
    %v256 = vunpack.c.l.b16 %v56
    %v257 = vunpack.c.l.b16 %v57
    %v258 = vunpack.c.l.b16 %v58
    %v259 = vunpack.c.l.b16 %v59
    %v260 = vunpack.c.l.b16 %v60
    %v261 = vunpack.c.l.b16 %v61
    %v262 = vunpack.c.l.b16 %v62
    %v263 = vunpack.c.l.b16 %v63
    %v264 = vunpack.c.l.b16 %v64
    %v265 = vunpack.c.l.b16 %v65
    %v266 = vunpack.c.l.b16 %v66
    %v267 = vunpack.c.l.b16 %v67
    %v268 = vunpack.c.l.b16 %v68
    %v269 = vunpack.c.l.b16 %v69
    %v270 = vunpack.c.l.b16 %v70
    %v271 = vunpack.c.l.b16 %v71
    %v272 = vunpack.c.l.b16 %v72
    %v273 = vunpack.c.l.b16 %v73
    %v274 = vunpack.c.l.b16 %v74
    %v275 = vunpack.c.l.b16 %v75
    %v276 = vunpack.c.l.b16 %v76
    %v277 = vunpack.c.l.b16 %v77
    %v278 = vunpack.c.l.b16 %v78
    %v279 = vunpack.c.l.b16 %v79
    %v280 = vunpack.c.l.b16 %v80
    %v281 = vunpack.c.l.b16 %v81
    %v282 = vunpack.c.l.b16 %v82
    %v283 = vunpack.c.l.b16 %v83
    %v284 = vunpack.c.l.b16 %v84
    %v285 = vunpack.c.l.b16 %v85
    %v286 = vunpack.c.l.b16 %v86
    %v287 = vunpack.c.l.b16 %v87
    %v288 = vunpack.c.l.b16 %v88
    %v289 = vunpack.c.l.b16 %v89
    %v290 = vunpack.c.l.b16 %v90
    %v291 = vunpack.c.l.b16 %v91
    %v292 = vunpack.c.l.b16 %v92
    %v293 = vunpack.c.l.b16 %v93
    %v294 = vunpack.c.l.b16 %v94
    %v295 = vunpack.c.l.b16 %v95
    %v296 = vunpack.c.l.b16 %v96
    %v297 = vunpack.c.l.b16 %v97
    %v298 = vunpack.c.l.b16 %v98
    %v299 = vunpack.c.l.b16 %v99
    %v300 = vunpack.c.l.b16 %v100
    %v301 = vunpack.c.l.b16 %v101
    %v302 = vunpack.c.l.b16 %v102
    %v303 = vunpack.c.l.b16 %v103
    %v304 = vunpack.c.l.b16 %v104
    %v305 = vunpack.c.l.b16 %v105
    %v306 = vunpack.c.l.b16 %v106
    %v307 = vunpack.c.l.b16 %v107
    %v308 = vunpack.c.l.b16 %v108
    %v309 = vunpack.c.l.b16 %v109
    %v310 = vunpack.c.l.b16 %v110
    %v311 = vunpack.c.l.b16 %v111
    %v312 = vunpack.c.l.b16 %v112
    %v313 = vunpack.c.l.b16 %v113
    %v314 = vunpack.c.l.b16 %v114
    %v315 = vunpack.c.l.b16 %v115
    %v316 = vunpack.c.l.b16 %v116
    %v317 = vunpack.c.l.b16 %v117
    %v318 = vunpack.c.l.b16 %v118
    %v319 = vunpack.c.l.b16 %v119
    %v320 = vunpack.c.l.b16 %v120
    %v321 = vunpack.c.l.b16 %v121
    %v322 = vunpack.c.l.b16 %v122
    %v323 = vunpack.c.l.b16 %v123
    %v324 = vunpack.c.l.b16 %v124
    %v325 = vunpack.c.l.b16 %v125
    %v326 = vunpack.c.l.b16 %v126
    %v327 = vunpack.c.l.b16 %v127
    %v328 = vunpack.c.l.b16 %v128
    %v329 = vunpack.c.l.b16 %v129
    %v330 = vunpack.c.l.b16 %v130
    %v331 = vunpack.c.l.b16 %v131
    %v332 = vunpack.c.l.b16 %v132
    %v333 = vunpack.c.l.b16 %v133
    %v334 = vunpack.c.l.b16 %v134
    %v335 = vunpack.c.l.b16 %v135
    %v336 = vunpack.c.l.b16 %v136
    %v337 = vunpack.c.l.b16 %v137
    %v338 = vunpack.c.l.b16 %v138
    %v339 = vunpack.c.l.b16 %v139
    %v340 = vunpack.c.l.b16 %v140
    %v341 = vunpack.c.l.b16 %v141
    %v342 = vunpack.c.l.b16 %v142
    %v343 = vunpack.c.l.b16 %v143
    %v344 = vunpack.c.l.b16 %v144
    %v345 = vunpack.c.l.b16 %v145
    %v346 = vpack.c.b16 %v249, %v248
    %v347 = vpack.c.b16 %v251, %v250
    %v348 = vpack.c.b16 %v253, %v252
    %v349 = vpack.c.b16 %v255, %v254
    %v350 = vpack.c.b16 %v257, %v256
    %v351 = vpack.c.b16 %v259, %v258
    %v352 = vpack.c.b16 %v261, %v260
    %v353 = vpack.c.b16 %v263, %v262
    %v354 = vpack.c.b16 %v265, %v264
    %v355 = vpack.c.b16 %v267, %v266
    %v356 = vpack.c.b16 %v269, %v268
    %v357 = vpack.c.b16 %v271, %v270
    %v358 = vpack.c.b16 %v273, %v272
    %v359 = vpack.c.b16 %v275, %v274
    %v360 = vpack.c.b16 %v277, %v276
    %v361 = vpack.c.b16 %v279, %v278
    %v362 = vpack.c.b16 %v281, %v280
    %v363 = vpack.c.b16 %v283, %v282
    %v364 = vpack.c.b16 %v285, %v284
    %v365 = vpack.c.b16 %v287, %v286
    %v366 = vpack.c.b16 %v289, %v288
    %v367 = vpack.c.b16 %v291, %v290
    %v368 = vpack.c.b16 %v293, %v292
    %v369 = vpack.c.b16 %v295, %v294
    %v370 = vpack.c.b16 %v297, %v296
    %v371 = vpack.c.b16 %v299, %v298
    %v372 = vpack.c.b16 %v301, %v300
    %v373 = vpack.c.b16 %v303, %v302
    %v374 = vpack.c.b16 %v305, %v304
    %v375 = vpack.c.b16 %v307, %v306
    %v376 = vpack.c.b16 %v309, %v308
    %v377 = vpack.c.b16 %v311, %v310
    %v378 = vpack.c.b16 %v313, %v312
    %v379 = vpack.c.b16 %v315, %v314
    %v380 = vpack.c.b16 %v317, %v316
    %v381 = vpack.c.b16 %v319, %v318
    %v382 = vpack.c.b16 %v321, %v320
    %v383 = vpack.c.b16 %v323, %v322
    %v384 = vpack.c.b16 %v325, %v324
    %v385 = vpack.c.b16 %v327, %v326
    %v386 = vpack.c.b16 %v329, %v328
    %v387 = vpack.c.b16 %v331, %v330
    %v388 = vpack.c.b16 %v333, %v332
    %v389 = vpack.c.b16 %v335, %v334
    %v390 = vpack.c.b16 %v337, %v336
    %v391 = vpack.c.b16 %v339, %v338
    %v392 = vpack.c.b16 %v341, %v340
    %v393 = vpack.c.b16 %v343, %v342
    %v394 = vpack.c.b16 %v345, %v344
    %vm444 = vcmask 130048
    %v446 = vsel %vm444, %v47, 0
    %448 = vmatpush.bf16.msra.mxu0 %v353
    %449 = vmatpush.bf16.msra.mxu0 %v352
    %450 = vmatpush.bf16.msra.mxu0 %v351
    %451 = vmatpush.bf16.msra.mxu0 %v350
    %452 = vmatpush.bf16.msra.mxu0 %v349
    %453 = vmatpush.bf16.msra.mxu0 %v348
    %454 = vmatpush.bf16.msra.mxu0 %v347
    %455 = vmatpush.bf16.msra.mxu0 %v346
    %456 = vmatmul.bf16.gmra.mxu0 %v41
    %v457 = vpop.f32.mrf.mxu0
    %v458 = vadd.f32 %v148, %v457
    %v459 = vpop.f32.mrf.mxu0
    %460 = vdwg.mxu0
    %461 = vmatpush.bf16.msra.mxu0 %v361
    %462 = vmatpush.bf16.msra.mxu0 %v360
    %463 = vmatpush.bf16.msra.mxu0 %v359
    %464 = vmatpush.bf16.msra.mxu0 %v358
    %465 = vmatpush.bf16.msra.mxu0 %v357
    %466 = vmatpush.bf16.msra.mxu0 %v356
    %467 = vmatpush.bf16.msra.mxu0 %v355
    %468 = vmatpush.bf16.msra.mxu0 %v354
    %469 = vmatmul.bf16.gmra.mxu0 %v42
    %v470 = vpop.f32.mrf.mxu0
    %v471 = vadd.f32 %v458, %v470
    %v472 = vpop.f32.mrf.mxu0
    %473 = vdwg.mxu0
    %474 = vmatpush.bf16.msra.mxu0 %v369
    %475 = vmatpush.bf16.msra.mxu0 %v368
    %476 = vmatpush.bf16.msra.mxu0 %v367
    %477 = vmatpush.bf16.msra.mxu0 %v366
    %478 = vmatpush.bf16.msra.mxu0 %v365
    %479 = vmatpush.bf16.msra.mxu0 %v364
    %480 = vmatpush.bf16.msra.mxu0 %v363
    %481 = vmatpush.bf16.msra.mxu0 %v362
    %482 = vmatmul.bf16.gmra.mxu0 %v43
    %v483 = vpop.f32.mrf.mxu0
    %v484 = vadd.f32 %v471, %v483
    %v485 = vpop.f32.mrf.mxu0
    %486 = vdwg.mxu0
    %487 = vmatpush.bf16.msra.mxu0 %v377
    %488 = vmatpush.bf16.msra.mxu0 %v376
    %489 = vmatpush.bf16.msra.mxu0 %v375
    %490 = vmatpush.bf16.msra.mxu0 %v374
    %491 = vmatpush.bf16.msra.mxu0 %v373
    %492 = vmatpush.bf16.msra.mxu0 %v372
    %493 = vmatpush.bf16.msra.mxu0 %v371
    %494 = vmatpush.bf16.msra.mxu0 %v370
    %495 = vmatmul.bf16.gmra.mxu0 %v44
    %v496 = vpop.f32.mrf.mxu0
    %v497 = vadd.f32 %v484, %v496
    %v498 = vpop.f32.mrf.mxu0
    %499 = vdwg.mxu0
    %500 = vmatpush.bf16.msra.mxu0 %v385
    %501 = vmatpush.bf16.msra.mxu0 %v384
    %502 = vmatpush.bf16.msra.mxu0 %v383
    %503 = vmatpush.bf16.msra.mxu0 %v382
    %504 = vmatpush.bf16.msra.mxu0 %v381
    %505 = vmatpush.bf16.msra.mxu0 %v380
    %506 = vmatpush.bf16.msra.mxu0 %v379
    %507 = vmatpush.bf16.msra.mxu0 %v378
    %508 = vmatmul.bf16.gmra.mxu0 %v45
    %v509 = vpop.f32.mrf.mxu0
    %v510 = vadd.f32 %v497, %v509
    %v511 = vpop.f32.mrf.mxu0
    %512 = vdwg.mxu0
    %513 = vmatpush.bf16.msra.mxu0 %v393
    %514 = vmatpush.bf16.msra.mxu0 %v392
    %515 = vmatpush.bf16.msra.mxu0 %v391
    %516 = vmatpush.bf16.msra.mxu0 %v390
    %517 = vmatpush.bf16.msra.mxu0 %v389
    %518 = vmatpush.bf16.msra.mxu0 %v388
    %519 = vmatpush.bf16.msra.mxu0 %v387
    %520 = vmatpush.bf16.msra.mxu0 %v386
    %521 = vmatmul.bf16.gmra.mxu0 %v46
    %v522 = vpop.f32.mrf.mxu0
    %v523 = vadd.f32 %v510, %v522
    %v524 = vpop.f32.mrf.mxu0
    %525 = vdwg.mxu0
    %526 = vmatpush.bf16.msra.mxu0 0
    %527 = vmatpush.bf16.msra.mxu0 0
    %528 = vmatpush.bf16.msra.mxu0 0
    %529 = vmatpush.bf16.msra.mxu0 0
    %530 = vmatpush.bf16.msra.mxu0 0
    %531 = vmatpush.bf16.msra.mxu0 0
    %532 = vmatpush.bf16.msra.mxu0 0
    %533 = vmatpush.bf16.msra.mxu0 %v394
    %534 = vmatmul.bf16.gmra.mxu0 %v446
    %v535 = vpop.f32.mrf.mxu0
    %v536 = vadd.f32 %v523, %v535
    %v537 = vpop.f32.mrf.mxu0
    %538 = vdwg.mxu0
    %v539 = vmax.f32 %v536, 0.0
    %v540 = vpack.c.bf16 %v539, %v539
    %v541 = vld [vmem:[%s3] sm:$0xf]
    %v542 = vld [vmem:[%s3 + $0x4] sm:$0xf]
    %v543 = vld [vmem:[%s3 + $0x8] sm:$0xf]
    %v544 = vld [vmem:[%s3 + $0xc] sm:$0xf]
    %v545 = vld [vmem:[%s3 + $0x10] sm:$0xf]
    %v546 = vld [vmem:[%s3 + $0x14] sm:$0xf]
    %v547 = vld [vmem:[%s3 + $0x18] sm:$0xf]
    %v548 = vld [vmem:[%s3 + $0x1c] sm:$0xf]
    %v549 = vld [vmem:[%s3 + $0x20] sm:$0xf]
    %v550 = vld [vmem:[%s3 + $0x24] sm:$0xf]
    %v551 = vld [vmem:[%s3 + $0x28] sm:$0xf]
    %v552 = vld [vmem:[%s3 + $0x2c] sm:$0xf]
    %v553 = vld [vmem:[%s3 + $0x30] sm:$0xf]
    %v554 = vld [vmem:[%s3 + $0x34] sm:$0xf]
    %v555 = vld [vmem:[%s3 + $0x38] sm:$0xf]
    %v556 = vld [vmem:[%s3 + $0x3c] sm:$0xf]
    %v557 = vld [vmem:[%s4] sm:$0x1]
    %v559 = vperm.slane %v557, 0
    %v577 = vunpack.c.l.b16 %v541
    %v578 = vunpack.c.l.b16 %v542
    %v579 = vunpack.c.l.b16 %v543
    %v580 = vunpack.c.l.b16 %v544
    %v581 = vunpack.c.l.b16 %v545
    %v582 = vunpack.c.l.b16 %v546
    %v583 = vunpack.c.l.b16 %v547
    %v584 = vunpack.c.l.b16 %v548
    %v585 = vunpack.c.l.b16 %v549
    %v586 = vunpack.c.l.b16 %v550
    %v587 = vunpack.c.l.b16 %v551
    %v588 = vunpack.c.l.b16 %v552
    %v589 = vunpack.c.l.b16 %v553
    %v590 = vunpack.c.l.b16 %v554
    %v591 = vunpack.c.l.b16 %v555
    %v592 = vunpack.c.l.b16 %v556
    %v593 = vpack.c.b16 %v578, %v577
    %v594 = vpack.c.b16 %v580, %v579
    %v595 = vpack.c.b16 %v582, %v581
    %v596 = vpack.c.b16 %v584, %v583
    %v597 = vpack.c.b16 %v586, %v585
    %v598 = vpack.c.b16 %v588, %v587
    %v599 = vpack.c.b16 %v590, %v589
    %v600 = vpack.c.b16 %v592, %v591
    %609 = vmatpush.bf16.msra.mxu0 %v600
    %610 = vmatpush.bf16.msra.mxu0 %v599
    %611 = vmatpush.bf16.msra.mxu0 %v598
    %612 = vmatpush.bf16.msra.mxu0 %v597
    %613 = vmatpush.bf16.msra.mxu0 %v596
    %614 = vmatpush.bf16.msra.mxu0 %v595
    %615 = vmatpush.bf16.msra.mxu0 %v594
    %616 = vmatpush.bf16.msra.mxu0 %v593
    %617 = vmatmul.bf16.gmra.mxu0 %v540
    %v618 = vpop.f32.mrf.mxu0
    %v619 = vadd.f32 %v559, %v618
    %v620 = vpop.f32.mrf.mxu0
    %621 = vdwg.mxu0
    %v622 = vmax.f32 %v619, 0.0
    %v623 = vpack.c.bf16 %v622, %v622
    %v624 = vld [vmem:[%s5] sm:$0xf]
    %v625 = vld [vmem:[%s5 + $0x4] sm:$0xf]
    %v626 = vld [vmem:[%s5 + $0x8] sm:$0xf]
    %v627 = vld [vmem:[%s5 + $0xc] sm:$0xf]
    %v628 = vld [vmem:[%s5 + $0x10] sm:$0xf]
    %v629 = vld [vmem:[%s5 + $0x14] sm:$0xf]
    %v630 = vld [vmem:[%s5 + $0x18] sm:$0xf]
    %v631 = vld [vmem:[%s5 + $0x1c] sm:$0xf]
    %v632 = vld [vmem:[%s6] sm:$0x1]
    %v634 = vperm.slane %v632, 0
    %v644 = vunpack.c.l.b16 %v624
    %v645 = vunpack.c.l.b16 %v625
    %v646 = vunpack.c.l.b16 %v626
    %v647 = vunpack.c.l.b16 %v627
    %v648 = vunpack.c.l.b16 %v628
    %v649 = vunpack.c.l.b16 %v629
    %v650 = vunpack.c.l.b16 %v630
    %v651 = vunpack.c.l.b16 %v631
    %v652 = vpack.c.b16 %v645, %v644
    %v653 = vpack.c.b16 %v647, %v646
    %v654 = vpack.c.b16 %v649, %v648
    %v655 = vpack.c.b16 %v651, %v650
    %vm660 = vcmask 523264
    %v662 = vsel %vm660, %v623, 0
    %664 = vmatpush.bf16.msra.mxu0 0
    %665 = vmatpush.bf16.msra.mxu0 0
    %666 = vmatpush.bf16.msra.mxu0 0
    %667 = vmatpush.bf16.msra.mxu0 0
    %668 = vmatpush.bf16.msra.mxu0 %v655
    %669 = vmatpush.bf16.msra.mxu0 %v654
    %670 = vmatpush.bf16.msra.mxu0 %v653
    %671 = vmatpush.bf16.msra.mxu0 %v652
    %672 = vmatmul.bf16.gmra.mxu0 %v662
    %v673 = vpop.f32.mrf.mxu0
    %v674 = vadd.f32 %v634, %v673
    %v675 = vpop.f32.mrf.mxu0
    %676 = vdwg.mxu0
    %v677 = vmax.f32 %v674, 0.0
    %v678 = vpack.c.bf16 %v677, %v677
    %v679 = vld [vmem:[%s7] sm:$0xff]
    %v680 = vld [vmem:[%s7 + $0x8] sm:$0xff]
    %v681 = vld [vmem:[%s7 + $0x10] sm:$0xff]
    %v682 = vld [vmem:[%s7 + $0x18] sm:$0xf]
    %v683 = vld [vmem:[%s7 + $0x1c] sm:$0xff]
    %v684 = vld [vmem:[%s7 + $0x24] sm:$0xff]
    %v685 = vld [vmem:[%s7 + $0x2c] sm:$0xff]
    %v686 = vld [vmem:[%s7 + $0x34] sm:$0xf]
    %v687 = vld [vmem:[%s7 + $0x38] sm:$0xff]
    %v688 = vld [vmem:[%s7 + $0x40] sm:$0xff]
    %v689 = vld [vmem:[%s7 + $0x48] sm:$0xff]
    %v690 = vld [vmem:[%s7 + $0x50] sm:$0xf]
    %v691 = vld [vmem:[%s7 + $0x54] sm:$0xff]
    %v692 = vld [vmem:[%s7 + $0x5c] sm:$0xff]
    %v693 = vld [vmem:[%s7 + $0x64] sm:$0xff]
    %v694 = vld [vmem:[%s7 + $0x6c] sm:$0xf]
    %v695 = vld [vmem:[%s7 + $0x70] sm:$0xff]
    %v696 = vld [vmem:[%s7 + $0x78] sm:$0xff]
    %v697 = vld [vmem:[%s7 + $0x80] sm:$0xff]
    %v698 = vld [vmem:[%s7 + $0x88] sm:$0xf]
    %v699 = vld [vmem:[%s7 + $0x8c] sm:$0xff]
    %v700 = vld [vmem:[%s7 + $0x94] sm:$0xff]
    %v701 = vld [vmem:[%s7 + $0x9c] sm:$0xff]
    %v702 = vld [vmem:[%s7 + $0xa4] sm:$0xf]
    %v703 = vld [vmem:[%s7 + $0xa8] sm:$0xff]
    %v704 = vld [vmem:[%s7 + $0xb0] sm:$0xff]
    %v705 = vld [vmem:[%s7 + $0xb8] sm:$0xff]
    %v706 = vld [vmem:[%s7 + $0xc0] sm:$0xf]
    %v707 = vld [vmem:[%s7 + $0xc4] sm:$0xff]
    %v708 = vld [vmem:[%s7 + $0xcc] sm:$0xff]
    %v709 = vld [vmem:[%s7 + $0xd4] sm:$0xff]
    %v710 = vld [vmem:[%s7 + $0xdc] sm:$0xf]
    %v711 = vld [vmem:[%s7 + $0xe0] sm:$0xff]
    %v712 = vld [vmem:[%s7 + $0xe8] sm:$0xff]
    %v713 = vld [vmem:[%s7 + $0xf0] sm:$0xff]
    %v714 = vld [vmem:[%s7 + $0xf8] sm:$0xf]
    %v715 = vld [vmem:[%s7 + $0xfc] sm:$0xff]
    %v716 = vld [vmem:[%s7 + $0x104] sm:$0xff]
    %v717 = vld [vmem:[%s7 + $0x10c] sm:$0xff]
    %v718 = vld [vmem:[%s7 + $0x114] sm:$0xf]
    %v719 = vld [vmem:[%s7 + $0x118] sm:$0xff]
    %v720 = vld [vmem:[%s7 + $0x120] sm:$0xff]
    %v721 = vld [vmem:[%s7 + $0x128] sm:$0xff]
    %v722 = vld [vmem:[%s7 + $0x130] sm:$0xf]
    %v723 = vld [vmem:[%s7 + $0x134] sm:$0xff]
    %v724 = vld [vmem:[%s7 + $0x13c] sm:$0xff]
    %v725 = vld [vmem:[%s7 + $0x144] sm:$0xff]
    %v726 = vld [vmem:[%s7 + $0x14c] sm:$0xf]
    %v727 = vld [vmem:[%s7 + $0x150] sm:$0xff]
    %v728 = vld [vmem:[%s7 + $0x158] sm:$0xff]
    %v729 = vld [vmem:[%s7 + $0x160] sm:$0xff]
    %v730 = vld [vmem:[%s7 + $0x168] sm:$0xf]
    %v731 = vld [vmem:[%s7 + $0x16c] sm:$0xff]
    %v732 = vld [vmem:[%s7 + $0x174] sm:$0xff]
    %v733 = vld [vmem:[%s7 + $0x17c] sm:$0xff]
    %v734 = vld [vmem:[%s7 + $0x184] sm:$0xf]
    %v735 = vld [vmem:[%s7 + $0x188] sm:$0xff]
    %v736 = vld [vmem:[%s7 + $0x190] sm:$0xff]
    %v737 = vld [vmem:[%s7 + $0x198] sm:$0xff]
    %v738 = vld [vmem:[%s7 + $0x1a0] sm:$0xf]
    %v739 = vld [vmem:[%s7 + $0x1a4] sm:$0xff]
    %v740 = vld [vmem:[%s7 + $0x1ac] sm:$0xff]
    %v741 = vld [vmem:[%s7 + $0x1b4] sm:$0xff]
    %v742 = vld [vmem:[%s7 + $0x1bc] sm:$0xf]
    %v743 = vld [vmem:[%s8] sm:$0x7f]
    %v745 = vperm.slane %v743, 0
    %v746 = vperm.slane %v743, 1
    %v747 = vperm.slane %v743, 2
    %v748 = vperm.slane %v743, 3
    %v749 = vperm.slane %v743, 4
    %v750 = vperm.slane %v743, 5
    %v751 = vperm.slane %v743, 6
    %v823 = vunpack.c.l.b16 %v679
    %v824 = vunpack.c.h.b16 %v679
    %v825 = vunpack.c.l.b16 %v680
    %v826 = vunpack.c.h.b16 %v680
    %v827 = vunpack.c.l.b16 %v681
    %v828 = vunpack.c.h.b16 %v681
    %v829 = vunpack.c.l.b16 %v682
    %v830 = vunpack.c.l.b16 %v683
    %v831 = vunpack.c.h.b16 %v683
    %v832 = vunpack.c.l.b16 %v684
    %v833 = vunpack.c.h.b16 %v684
    %v834 = vunpack.c.l.b16 %v685
    %v835 = vunpack.c.h.b16 %v685
    %v836 = vunpack.c.l.b16 %v686
    %v837 = vunpack.c.l.b16 %v687
    %v838 = vunpack.c.h.b16 %v687
    %v839 = vunpack.c.l.b16 %v688
    %v840 = vunpack.c.h.b16 %v688
    %v841 = vunpack.c.l.b16 %v689
    %v842 = vunpack.c.h.b16 %v689
    %v843 = vunpack.c.l.b16 %v690
    %v844 = vunpack.c.l.b16 %v691
    %v845 = vunpack.c.h.b16 %v691
    %v846 = vunpack.c.l.b16 %v692
    %v847 = vunpack.c.h.b16 %v692
    %v848 = vunpack.c.l.b16 %v693
    %v849 = vunpack.c.h.b16 %v693
    %v850 = vunpack.c.l.b16 %v694
    %v851 = vunpack.c.l.b16 %v695
    %v852 = vunpack.c.h.b16 %v695
    %v853 = vunpack.c.l.b16 %v696
    %v854 = vunpack.c.h.b16 %v696
    %v855 = vunpack.c.l.b16 %v697
    %v856 = vunpack.c.h.b16 %v697
    %v857 = vunpack.c.l.b16 %v698
    %v858 = vunpack.c.l.b16 %v699
    %v859 = vunpack.c.h.b16 %v699
    %v860 = vunpack.c.l.b16 %v700
    %v861 = vunpack.c.h.b16 %v700
    %v862 = vunpack.c.l.b16 %v701
    %v863 = vunpack.c.h.b16 %v701
    %v864 = vunpack.c.l.b16 %v702
    %v865 = vunpack.c.l.b16 %v703
    %v866 = vunpack.c.h.b16 %v703
    %v867 = vunpack.c.l.b16 %v704
    %v868 = vunpack.c.h.b16 %v704
    %v869 = vunpack.c.l.b16 %v705
    %v870 = vunpack.c.h.b16 %v705
    %v871 = vunpack.c.l.b16 %v706
    %v872 = vunpack.c.l.b16 %v707
    %v873 = vunpack.c.h.b16 %v707
    %v874 = vunpack.c.l.b16 %v708
    %v875 = vunpack.c.h.b16 %v708
    %v876 = vunpack.c.l.b16 %v709
    %v877 = vunpack.c.h.b16 %v709
    %v878 = vunpack.c.l.b16 %v710
    %v879 = vunpack.c.l.b16 %v711
    %v880 = vunpack.c.h.b16 %v711
    %v881 = vunpack.c.l.b16 %v712
    %v882 = vunpack.c.h.b16 %v712
    %v883 = vunpack.c.l.b16 %v713
    %v884 = vunpack.c.h.b16 %v713
    %v885 = vunpack.c.l.b16 %v714
    %v886 = vunpack.c.l.b16 %v715
    %v887 = vunpack.c.h.b16 %v715
    %v888 = vunpack.c.l.b16 %v716
    %v889 = vunpack.c.h.b16 %v716
    %v890 = vunpack.c.l.b16 %v717
    %v891 = vunpack.c.h.b16 %v717
    %v892 = vunpack.c.l.b16 %v718
    %v893 = vunpack.c.l.b16 %v719
    %v894 = vunpack.c.h.b16 %v719
    %v895 = vunpack.c.l.b16 %v720
    %v896 = vunpack.c.h.b16 %v720
    %v897 = vunpack.c.l.b16 %v721
    %v898 = vunpack.c.h.b16 %v721
    %v899 = vunpack.c.l.b16 %v722
    %v900 = vunpack.c.l.b16 %v723
    %v901 = vunpack.c.h.b16 %v723
    %v902 = vunpack.c.l.b16 %v724
    %v903 = vunpack.c.h.b16 %v724
    %v904 = vunpack.c.l.b16 %v725
    %v905 = vunpack.c.h.b16 %v725
    %v906 = vunpack.c.l.b16 %v726
    %v907 = vunpack.c.l.b16 %v727
    %v908 = vunpack.c.h.b16 %v727
    %v909 = vunpack.c.l.b16 %v728
    %v910 = vunpack.c.h.b16 %v728
    %v911 = vunpack.c.l.b16 %v729
    %v912 = vunpack.c.h.b16 %v729
    %v913 = vunpack.c.l.b16 %v730
    %v914 = vunpack.c.l.b16 %v731
    %v915 = vunpack.c.h.b16 %v731
    %v916 = vunpack.c.l.b16 %v732
    %v917 = vunpack.c.h.b16 %v732
    %v918 = vunpack.c.l.b16 %v733
    %v919 = vunpack.c.h.b16 %v733
    %v920 = vunpack.c.l.b16 %v734
    %v921 = vunpack.c.l.b16 %v735
    %v922 = vunpack.c.h.b16 %v735
    %v923 = vunpack.c.l.b16 %v736
    %v924 = vunpack.c.h.b16 %v736
    %v925 = vunpack.c.l.b16 %v737
    %v926 = vunpack.c.h.b16 %v737
    %v927 = vunpack.c.l.b16 %v738
    %v928 = vunpack.c.l.b16 %v739
    %v929 = vunpack.c.h.b16 %v739
    %v930 = vunpack.c.l.b16 %v740
    %v931 = vunpack.c.h.b16 %v740
    %v932 = vunpack.c.l.b16 %v741
    %v933 = vunpack.c.h.b16 %v741
    %v934 = vunpack.c.l.b16 %v742
    %v935 = vpack.c.b16 %v830, %v823
    %v936 = vpack.c.b16 %v831, %v824
    %v937 = vpack.c.b16 %v832, %v825
    %v938 = vpack.c.b16 %v833, %v826
    %v939 = vpack.c.b16 %v834, %v827
    %v940 = vpack.c.b16 %v835, %v828
    %v941 = vpack.c.b16 %v836, %v829
    %v942 = vpack.c.b16 %v844, %v837
    %v943 = vpack.c.b16 %v845, %v838
    %v944 = vpack.c.b16 %v846, %v839
    %v945 = vpack.c.b16 %v847, %v840
    %v946 = vpack.c.b16 %v848, %v841
    %v947 = vpack.c.b16 %v849, %v842
    %v948 = vpack.c.b16 %v850, %v843
    %v949 = vpack.c.b16 %v858, %v851
    %v950 = vpack.c.b16 %v859, %v852
    %v951 = vpack.c.b16 %v860, %v853
    %v952 = vpack.c.b16 %v861, %v854
    %v953 = vpack.c.b16 %v862, %v855
    %v954 = vpack.c.b16 %v863, %v856
    %v955 = vpack.c.b16 %v864, %v857
    %v956 = vpack.c.b16 %v872, %v865
    %v957 = vpack.c.b16 %v873, %v866
    %v958 = vpack.c.b16 %v874, %v867
    %v959 = vpack.c.b16 %v875, %v868
    %v960 = vpack.c.b16 %v876, %v869
    %v961 = vpack.c.b16 %v877, %v870
    %v962 = vpack.c.b16 %v878, %v871
    %v963 = vpack.c.b16 %v886, %v879
    %v964 = vpack.c.b16 %v887, %v880
    %v965 = vpack.c.b16 %v888, %v881
    %v966 = vpack.c.b16 %v889, %v882
    %v967 = vpack.c.b16 %v890, %v883
    %v968 = vpack.c.b16 %v891, %v884
    %v969 = vpack.c.b16 %v892, %v885
    %v970 = vpack.c.b16 %v900, %v893
    %v971 = vpack.c.b16 %v901, %v894
    %v972 = vpack.c.b16 %v902, %v895
    %v973 = vpack.c.b16 %v903, %v896
    %v974 = vpack.c.b16 %v904, %v897
    %v975 = vpack.c.b16 %v905, %v898
    %v976 = vpack.c.b16 %v906, %v899
    %v977 = vpack.c.b16 %v914, %v907
    %v978 = vpack.c.b16 %v915, %v908
    %v979 = vpack.c.b16 %v916, %v909
    %v980 = vpack.c.b16 %v917, %v910
    %v981 = vpack.c.b16 %v918, %v911
    %v982 = vpack.c.b16 %v919, %v912
    %v983 = vpack.c.b16 %v920, %v913
    %v984 = vpack.c.b16 %v928, %v921
    %v985 = vpack.c.b16 %v929, %v922
    %v986 = vpack.c.b16 %v930, %v923
    %v987 = vpack.c.b16 %v931, %v924
    %v988 = vpack.c.b16 %v932, %v925
    %v989 = vpack.c.b16 %v933, %v926
    %v990 = vpack.c.b16 %v934, %v927
    %1047 = vmatpush.bf16.msra.mxu0 %v984
    %1048 = vmatpush.bf16.msra.mxu0 %v977
    %1049 = vmatpush.bf16.msra.mxu0 %v970
    %1050 = vmatpush.bf16.msra.mxu0 %v963
    %1051 = vmatpush.bf16.msra.mxu0 %v956
    %1052 = vmatpush.bf16.msra.mxu0 %v949
    %1053 = vmatpush.bf16.msra.mxu0 %v942
    %1054 = vmatpush.bf16.msra.mxu0 %v935
    %1055 = vmatmul.bf16.gmra.mxu0 %v678
    %v1056 = vpop.f32.mrf.mxu0
    %v1057 = vadd.f32 %v745, %v1056
    %v1058 = vpop.f32.mrf.mxu0
    %1059 = vdwg.mxu0
    %1060 = vmatpush.bf16.msra.mxu0 %v985
    %1061 = vmatpush.bf16.msra.mxu0 %v978
    %1062 = vmatpush.bf16.msra.mxu0 %v971
    %1063 = vmatpush.bf16.msra.mxu0 %v964
    %1064 = vmatpush.bf16.msra.mxu0 %v957
    %1065 = vmatpush.bf16.msra.mxu0 %v950
    %1066 = vmatpush.bf16.msra.mxu0 %v943
    %1067 = vmatpush.bf16.msra.mxu0 %v936
    %1068 = vmatmul.bf16.gmra.mxu0 %v678
    %v1069 = vpop.f32.mrf.mxu0
    %v1070 = vadd.f32 %v746, %v1069
    %v1071 = vpop.f32.mrf.mxu0
    %1072 = vdwg.mxu0
    %1073 = vmatpush.bf16.msra.mxu0 %v986
    %1074 = vmatpush.bf16.msra.mxu0 %v979
    %1075 = vmatpush.bf16.msra.mxu0 %v972
    %1076 = vmatpush.bf16.msra.mxu0 %v965
    %1077 = vmatpush.bf16.msra.mxu0 %v958
    %1078 = vmatpush.bf16.msra.mxu0 %v951
    %1079 = vmatpush.bf16.msra.mxu0 %v944
    %1080 = vmatpush.bf16.msra.mxu0 %v937
    %1081 = vmatmul.bf16.gmra.mxu0 %v678
    %v1082 = vpop.f32.mrf.mxu0
    %v1083 = vadd.f32 %v747, %v1082
    %v1084 = vpop.f32.mrf.mxu0
    %1085 = vdwg.mxu0
    %1086 = vmatpush.bf16.msra.mxu0 %v987
    %1087 = vmatpush.bf16.msra.mxu0 %v980
    %1088 = vmatpush.bf16.msra.mxu0 %v973
    %1089 = vmatpush.bf16.msra.mxu0 %v966
    %1090 = vmatpush.bf16.msra.mxu0 %v959
    %1091 = vmatpush.bf16.msra.mxu0 %v952
    %1092 = vmatpush.bf16.msra.mxu0 %v945
    %1093 = vmatpush.bf16.msra.mxu0 %v938
    %1094 = vmatmul.bf16.gmra.mxu0 %v678
    %v1095 = vpop.f32.mrf.mxu0
    %v1096 = vadd.f32 %v748, %v1095
    %v1097 = vpop.f32.mrf.mxu0
    %1098 = vdwg.mxu0
    %1099 = vmatpush.bf16.msra.mxu0 %v988
    %1100 = vmatpush.bf16.msra.mxu0 %v981
    %1101 = vmatpush.bf16.msra.mxu0 %v974
    %1102 = vmatpush.bf16.msra.mxu0 %v967
    %1103 = vmatpush.bf16.msra.mxu0 %v960
    %1104 = vmatpush.bf16.msra.mxu0 %v953
    %1105 = vmatpush.bf16.msra.mxu0 %v946
    %1106 = vmatpush.bf16.msra.mxu0 %v939
    %1107 = vmatmul.bf16.gmra.mxu0 %v678
    %v1108 = vpop.f32.mrf.mxu0
    %v1109 = vadd.f32 %v749, %v1108
    %v1110 = vpop.f32.mrf.mxu0
    %1111 = vdwg.mxu0
    %1112 = vmatpush.bf16.msra.mxu0 %v989
    %1113 = vmatpush.bf16.msra.mxu0 %v982
    %1114 = vmatpush.bf16.msra.mxu0 %v975
    %1115 = vmatpush.bf16.msra.mxu0 %v968
    %1116 = vmatpush.bf16.msra.mxu0 %v961
    %1117 = vmatpush.bf16.msra.mxu0 %v954
    %1118 = vmatpush.bf16.msra.mxu0 %v947
    %1119 = vmatpush.bf16.msra.mxu0 %v940
    %1120 = vmatmul.bf16.gmra.mxu0 %v678
    %v1121 = vpop.f32.mrf.mxu0
    %v1122 = vadd.f32 %v750, %v1121
    %v1123 = vpop.f32.mrf.mxu0
    %1124 = vdwg.mxu0
    %1125 = vmatpush.bf16.msra.mxu0 %v990
    %1126 = vmatpush.bf16.msra.mxu0 %v983
    %1127 = vmatpush.bf16.msra.mxu0 %v976
    %1128 = vmatpush.bf16.msra.mxu0 %v969
    %1129 = vmatpush.bf16.msra.mxu0 %v962
    %1130 = vmatpush.bf16.msra.mxu0 %v955
    %1131 = vmatpush.bf16.msra.mxu0 %v948
    %1132 = vmatpush.bf16.msra.mxu0 %v941
    %1133 = vmatmul.bf16.gmra.mxu0 %v678
    %v1134 = vpop.f32.mrf.mxu0
    %v1135 = vadd.f32 %v751, %v1134
    %v1136 = vpop.f32.mrf.mxu0
    %1137 = vdwg.mxu0
    %v1138 = vsub.f32 0.0, %v1057
    %v1139 = vsub.f32 0.0, %v1070
    %v1140 = vsub.f32 0.0, %v1083
    %v1141 = vsub.f32 0.0, %v1096
    %v1142 = vsub.f32 0.0, %v1109
    %v1143 = vsub.f32 0.0, %v1122
    %v1144 = vsub.f32 0.0, %v1135
    %v1145 = vmul.f32 %v1138, 1.442695
    %v1146 = vpow.pop %v1145
    %v1147 = vmul.f32 %v1139, 1.442695
    %v1148 = vpow.pop %v1147
    %v1149 = vmul.f32 %v1140, 1.442695
    %v1150 = vpow.pop %v1149
    %v1151 = vmul.f32 %v1141, 1.442695
    %v1152 = vpow.pop %v1151
    %v1153 = vmul.f32 %v1142, 1.442695
    %v1154 = vpow.pop %v1153
    %v1155 = vmul.f32 %v1143, 1.442695
    %v1156 = vpow.pop %v1155
    %v1157 = vmul.f32 %v1144, 1.442695
    %v1158 = vpow.pop %v1157
    %v1159 = vadd.f32 %v1146, 1.0
    %v1160 = vadd.f32 %v1148, 1.0
    %v1161 = vadd.f32 %v1150, 1.0
    %v1162 = vadd.f32 %v1152, 1.0
    %v1163 = vadd.f32 %v1154, 1.0
    %v1164 = vadd.f32 %v1156, 1.0
    %v1165 = vadd.f32 %v1158, 1.0
    %v1166 = vrcp.pop %v1159
    %v1167 = vrcp.pop %v1160
    %v1168 = vrcp.pop %v1161
    %v1169 = vrcp.pop %v1162
    %v1170 = vrcp.pop %v1163
    %v1171 = vrcp.pop %v1164
    %v1172 = vrcp.pop %v1165
    %1173 = vst [vmem:[#allocation2] sm:$0xff] %v1166
    %1174 = vst [vmem:[#allocation2 + $0x8] sm:$0xff] %v1167
    %1175 = vst [vmem:[#allocation2 + $0x10] sm:$0xff] %v1168
    %1176 = vst [vmem:[#allocation2 + $0x18] sm:$0xff] %v1169
    %1177 = vst [vmem:[#allocation2 + $0x20] sm:$0xff] %v1170
    %1178 = vst [vmem:[#allocation2 + $0x28] sm:$0xff] %v1171
    %1179 = vst.msk [vmem:[#allocation2 + $0x30] sm:$0xff] %vm444, %v1172
    // Predicated region
    $region38: #{tpu_custom_call.1} parent=1 // pred_check
      _
    $region39: #{tpu_custom_call.1} parent=1 // pred_check_branch
      %1181 = sbr.rel (0) target = $region41
    $region40: #{tpu_custom_call.1} parent=1 // pred_region
      %1183 = vsyncadd [#allocation3], 0
      %s1185 = sshll.u32 [#allocation2], 4
      %s1186 = int_to_ptr.vmem [resolvable:$true] %s1185
      %s1187 = sshll.u32 %s9, 4
      %s1188 = int_to_ptr.hbm [resolvable:$true] %s1187
      %1190 = dma.vmem_to_hbm [thread:$0]  %s1186, 896, %s1188, [#allocation3]
    $region41: #{tpu_custom_call.1} parent=1 // pred_fallthru
      _
    // Predicated region
    $region42: #{tpu_custom_call.1} parent=1 // pred_check
      _
    $region43: #{tpu_custom_call.1} parent=1 // pred_check_branch
      %1192 = sbr.rel (0) target = $region45
    $region44: #{tpu_custom_call.1} parent=1 // pred_region
      %1194 = dma.done [#allocation3], 896
    $region45: #{tpu_custom_call.1} parent=1 // pred_fallthru
      _
    %1195 = vsyncpa [#allocation3], 1

</llo_original>
